<compile_context>
chip_gen: v6e
topology: v6e:2x2x1
jax: 0.10.0
libtpu: 0.0.40
codegen_flags: <defaults>
</compile_context>

<pallas_src>
import jax
import jax.numpy as jnp
from jax.experimental import pallas as pl
from jax.experimental.pallas import tpu as pltpu

DROPOUT = 0.25          # identity in eval mode
HIDDEN_SIZE_1 = 128
HIDDEN_SIZE_2 = 64
HIDDEN_SIZE_3 = 4

_LANE = 128
_SUBLANE = 8


def _round_up(x, m):
    return (x + m - 1) // m * m


def _mlp_kernel(x_ref,
                w1_ref, b1_ref,
                w2_ref, b2_ref,
                w3_ref, b3_ref,
                w4_ref, b4_ref,
                o_ref):
    """Fused MLP: relu(x@W1+b1) -> relu(.@W2+b2) -> relu(.@W3+b3) -> .@W4+b4.
    Dropout = identity (eval mode). MXU runs in the weight dtype (bf16),
    accumulation / bias add / ReLU stay f32."""
    cd = w1_ref.dtype

    x = x_ref[...].astype(cd)
    h1 = jnp.dot(x, w1_ref[...], preferred_element_type=jnp.float32) + b1_ref[...]
    h1 = jnp.maximum(h1, 0.0)
    # Dropout(0.25) -> identity in eval mode

    h2 = jnp.dot(h1.astype(cd), w2_ref[...], preferred_element_type=jnp.float32) + b2_ref[...]
    h2 = jnp.maximum(h2, 0.0)
    # Dropout(0.25) -> identity in eval mode

    h3 = jnp.dot(h2.astype(cd), w3_ref[...], preferred_element_type=jnp.float32) + b3_ref[...]
    h3 = jnp.maximum(h3, 0.0)

    out = jnp.dot(h3.astype(cd), w4_ref[...], preferred_element_type=jnp.float32) + b4_ref[...]
    o_ref[...] = out.astype(o_ref.dtype)


def init_params(key, in_size, out_size,
                layer_1=HIDDEN_SIZE_1, layer_2=HIDDEN_SIZE_2, layer_3=HIDDEN_SIZE_3):
    """PyTorch-style uniform(+-1/sqrt(fan_in)) init.  Weights stored transposed
    ([in, out]) for the x @ W convention.  Raw f32 'reference' parameters."""
    dims = [(in_size, layer_1), (layer_1, layer_2), (layer_2, layer_3), (layer_3, out_size)]
    params = {}
    for i, (fan_in, fan_out) in enumerate(dims, start=1):
        key, kw, kb = jax.random.split(key, 3)
        bound = 1.0 / jnp.sqrt(jnp.float32(fan_in))
        params[f"w{i}"] = jax.random.uniform(kw, (fan_in, fan_out), jnp.float32,
                                             minval=-bound, maxval=bound)
        params[f"b{i}"] = jax.random.uniform(kb, (1, fan_out), jnp.float32,
                                             minval=-bound, maxval=bound)
    return params


def prepare_params(raw_params, compute_dtype=jnp.bfloat16):
    """One-time prep (hoisted out of the forward path):
      * zero-pad the 4-wide layer-3 dim to 128 lanes (exact: padded h3 columns
        are ReLU(0)=0 and the matching W4 rows are 0),
      * cast weights to the MXU compute dtype (bf16); biases stay f32."""
    h3 = raw_params["w3"].shape[1]
    h3_pad = max(_round_up(h3, _LANE), _LANE)      # 4 -> 128
    w3 = jnp.pad(raw_params["w3"], ((0, 0), (0, h3_pad - h3)))
    b3 = jnp.pad(raw_params["b3"], ((0, 0), (0, h3_pad - h3)))
    w4 = jnp.pad(raw_params["w4"], ((0, h3_pad - h3), (0, 0)))
    return {
        "w1": raw_params["w1"].astype(compute_dtype),
        "b1": raw_params["b1"].astype(jnp.float32),
        "w2": raw_params["w2"].astype(compute_dtype),
        "b2": raw_params["b2"].astype(jnp.float32),
        "w3": w3.astype(compute_dtype),
        "b3": b3.astype(jnp.float32),
        "w4": w4.astype(compute_dtype),
        "b4": raw_params["b4"].astype(jnp.float32),
    }


def net_forward(x, params, *, block_b=1024):
    """Run the fused MLP Pallas kernel.

    x:       [B, in_size]  (f32 or bf16; bf16 halves the dominant HBM read)
    params:  output of prepare_params()
    returns: [B, out_size] float32
    """
    B, in_size = x.shape
    h1 = params["w1"].shape[1]
    h2 = params["w2"].shape[1]
    out_size = params["w4"].shape[1]

    # Batch tiling: big tiles amortize per-step overhead; no padding of x —
    # the ragged final block is handled by Pallas (OOB writes dropped).
    bb = min(block_b, _round_up(B, _SUBLANE))
    if B >= 2 * _SUBLANE and pl.cdiv(B, bb) < 2:
        # Split mid-sized single-tile batches so both v7x TensorCores get work.
        bb = _round_up(pl.cdiv(B, 2), _SUBLANE)
    grid = (pl.cdiv(B, bb),)

    args = (x,
            params["w1"], params["b1"],
            params["w2"], params["b2"],
            params["w3"], params["b3"],
            params["w4"], params["b4"])

    def _tile(i):        # x / out: march along the batch axis
        return (i, 0)

    def _resident(i):    # weights / biases: same block every step (stay in VMEM)
        return (0, 0)

    in_specs = [pl.BlockSpec((bb, in_size), _tile)]
    in_specs += [pl.BlockSpec(a.shape, _resident) for a in args[1:]]
    # Narrow, unpadded output: last dim == full array dim satisfies (8,128) rule.
    out_spec = pl.BlockSpec((bb, out_size), _tile)

    # Cost estimate from the *logical* (unpadded) layer dims.
    flops = 2 * B * (in_size * h1 + h1 * h2 + h2 * HIDDEN_SIZE_3 + HIDDEN_SIZE_3 * out_size)
    bytes_accessed = (int(x.size) * x.dtype.itemsize
                      + B * out_size * 4
                      + sum(int(a.size) * a.dtype.itemsize for a in args[1:]))
    cost = pl.CostEstimate(flops=flops, transcendentals=0,
                           bytes_accessed=bytes_accessed)

    return pl.pallas_call(
        _mlp_kernel,
        out_shape=jax.ShapeDtypeStruct((B, out_size), jnp.float32),
        grid=grid,
        in_specs=in_specs,
        out_specs=out_spec,
        compiler_params=pltpu.CompilerParams(
            dimension_semantics=("parallel",)),
        cost_estimate=cost,
    )(*args)


def _reference_forward(x, raw_params, compute_dtype=jnp.bfloat16):
    """Plain-JAX reference mimicking the kernel numerics (bf16 matmul inputs,
    f32 accumulation, f32 bias/ReLU, eval-mode dropout = identity)."""
    def cd(a):
        return a.astype(compute_dtype).astype(jnp.float32)

    def mm(a, w):
        return jax.lax.dot(cd(a), cd(w), precision=jax.lax.Precision.HIGHEST)

    h = jnp.maximum(mm(x, raw_params["w1"]) + raw_params["b1"], 0.0)
    h = jnp.maximum(mm(h, raw_params["w2"]) + raw_params["b2"], 0.0)
    h = jnp.maximum(mm(h, raw_params["w3"]) + raw_params["b3"], 0.0)
    return mm(h, raw_params["w4"]) + raw_params["b4"]


if __name__ == "__main__":
    B, IN_SIZE, OUT_SIZE = 8, 32, 8

    key = jax.random.PRNGKey(0)
    key, kx = jax.random.split(key)
    x = jax.random.normal(kx, (B, IN_SIZE), jnp.float32)

    raw_params = init_params(key, IN_SIZE, OUT_SIZE)
    params = prepare_params(raw_params)          # one-time prep, hoisted

    # Small batch (single grid step).
    out = jax.block_until_ready(net_forward(x, params))
    ref = _reference_forward(x, raw_params)
    assert out.shape == (B, OUT_SIZE)
    assert jnp.allclose(out, ref, atol=1e-2, rtol=1e-2), "mismatch vs reference (small B)"

    # Large batch: multi-step grid with a ragged final block (1064 = 1024 + 40).
    key, kx2 = jax.random.split(key)
    x_big = jax.random.normal(kx2, (1024 + 40, IN_SIZE), jnp.float32)
    out_big = jax.block_until_ready(net_forward(x_big, params))
    ref_big = _reference_forward(x_big, raw_params)
    assert out_big.shape == ref_big.shape
    assert jnp.allclose(out_big, ref_big, atol=1e-2, rtol=1e-2), "mismatch (large B)"

    # Mid-sized batch: exercises the 2-step split (v7x dual-TC path) + ragged block.
    key, kx3 = jax.random.split(key)
    x_mid = jax.random.normal(kx3, (20, IN_SIZE), jnp.float32)
    out_mid = jax.block_until_ready(net_forward(x_mid, params))
    ref_mid = _reference_forward(x_mid, raw_params)
    assert out_mid.shape == ref_mid.shape
    assert jnp.allclose(out_mid, ref_mid, atol=1e-2, rtol=1e-2), "mismatch (mid B)"

    print("KERNEL_OK")
</pallas_src>

<mosaic_0001>
module attributes {stable_mosaic.version = 11 : i64} {
  func.func @_mlp_kernel(%arg0: i32, %arg1: memref<8x32xf32, #tpu.memory_space<vmem>>, %arg2: memref<32x128xbf16, #tpu.memory_space<vmem>>, %arg3: memref<1x128xf32, #tpu.memory_space<vmem>>, %arg4: memref<128x64xbf16, #tpu.memory_space<vmem>>, %arg5: memref<1x64xf32, #tpu.memory_space<vmem>>, %arg6: memref<64x128xbf16, #tpu.memory_space<vmem>>, %arg7: memref<1x128xf32, #tpu.memory_space<vmem>>, %arg8: memref<128x8xbf16, #tpu.memory_space<vmem>>, %arg9: memref<1x8xf32, #tpu.memory_space<vmem>>, %arg10: memref<8x8xf32, #tpu.memory_space<vmem>>) attributes {dimension_semantics = [#tpu.dimension_semantics<parallel>], iteration_bounds = array<i64: 1>, scalar_prefetch = 0 : i64, scratch_operands = 0 : i64, tpu.core_type = #tpu.core_type<tc>, window_params = [{transform_indices = @transform_0, window_bounds = array<i64: 8, 32>}, {pipeline_mode = #tpu.pipeline_mode<synchronous>, transform_indices = @transform_1, window_bounds = array<i64: 32, 128>}, {pipeline_mode = #tpu.pipeline_mode<synchronous>, transform_indices = @transform_2, window_bounds = array<i64: 1, 128>}, {pipeline_mode = #tpu.pipeline_mode<synchronous>, transform_indices = @transform_3, window_bounds = array<i64: 128, 64>}, {pipeline_mode = #tpu.pipeline_mode<synchronous>, transform_indices = @transform_4, window_bounds = array<i64: 1, 64>}, {pipeline_mode = #tpu.pipeline_mode<synchronous>, transform_indices = @transform_5, window_bounds = array<i64: 64, 128>}, {pipeline_mode = #tpu.pipeline_mode<synchronous>, transform_indices = @transform_6, window_bounds = array<i64: 1, 128>}, {pipeline_mode = #tpu.pipeline_mode<synchronous>, transform_indices = @transform_7, window_bounds = array<i64: 128, 8>}, {pipeline_mode = #tpu.pipeline_mode<synchronous>, transform_indices = @transform_8, window_bounds = array<i64: 1, 8>}, {transform_indices = @transform_9, window_bounds = array<i64: 8, 8>}]} {
    %c0 = arith.constant 0 : index
    %c0_0 = arith.constant 0 : index
    %0 = vector.load %arg1[%c0, %c0_0] : memref<8x32xf32, #tpu.memory_space<vmem>>, vector<8x32xf32>
    %1 = arith.truncf %0 : vector<8x32xf32> to vector<8x32xbf16>
    %c0_1 = arith.constant 0 : index
    %c0_2 = arith.constant 0 : index
    %2 = vector.load %arg2[%c0_1, %c0_2] : memref<32x128xbf16, #tpu.memory_space<vmem>>, vector<32x128xbf16>
    %cst = arith.constant dense<0.000000e+00> : vector<8x128xf32>
    %3 = tpu.matmul %1, %2, %cst {dimension_numbers = #tpu.dot_dimension_numbers<[1], [0], [0], [1], [0, 0, 1, 1], [], []>} : vector<8x32xbf16>, vector<32x128xbf16>, vector<8x128xf32> -> vector<8x128xf32>
    %c0_3 = arith.constant 0 : index
    %c0_4 = arith.constant 0 : index
    %4 = vector.load %arg3[%c0_3, %c0_4] : memref<1x128xf32, #tpu.memory_space<vmem>>, vector<1x128xf32>
    %5 = vector.broadcast %4 : vector<1x128xf32> to vector<8x128xf32>
    %6 = arith.addf %3, %5 : vector<8x128xf32>
    %cst_5 = arith.constant 0.000000e+00 : f32
    %7 = vector.broadcast %cst_5 : f32 to vector<8x128xf32>
    %8 = arith.maximumf %6, %7 : vector<8x128xf32>
    %9 = arith.truncf %8 : vector<8x128xf32> to vector<8x128xbf16>
    %c0_6 = arith.constant 0 : index
    %c0_7 = arith.constant 0 : index
    %10 = vector.load %arg4[%c0_6, %c0_7] : memref<128x64xbf16, #tpu.memory_space<vmem>>, vector<128x64xbf16>
    %cst_8 = arith.constant dense<0.000000e+00> : vector<8x64xf32>
    %11 = tpu.matmul %9, %10, %cst_8 {dimension_numbers = #tpu.dot_dimension_numbers<[1], [0], [0], [1], [0, 0, 1, 1], [], []>} : vector<8x128xbf16>, vector<128x64xbf16>, vector<8x64xf32> -> vector<8x64xf32>
    %c0_9 = arith.constant 0 : index
    %c0_10 = arith.constant 0 : index
    %12 = vector.load %arg5[%c0_9, %c0_10] : memref<1x64xf32, #tpu.memory_space<vmem>>, vector<1x64xf32>
    %13 = vector.broadcast %12 : vector<1x64xf32> to vector<8x64xf32>
    %14 = arith.addf %11, %13 : vector<8x64xf32>
    %cst_11 = arith.constant 0.000000e+00 : f32
    %15 = vector.broadcast %cst_11 : f32 to vector<8x64xf32>
    %16 = arith.maximumf %14, %15 : vector<8x64xf32>
    %17 = arith.truncf %16 : vector<8x64xf32> to vector<8x64xbf16>
    %c0_12 = arith.constant 0 : index
    %c0_13 = arith.constant 0 : index
    %18 = vector.load %arg6[%c0_12, %c0_13] : memref<64x128xbf16, #tpu.memory_space<vmem>>, vector<64x128xbf16>
    %cst_14 = arith.constant dense<0.000000e+00> : vector<8x128xf32>
    %19 = tpu.matmul %17, %18, %cst_14 {dimension_numbers = #tpu.dot_dimension_numbers<[1], [0], [0], [1], [0, 0, 1, 1], [], []>} : vector<8x64xbf16>, vector<64x128xbf16>, vector<8x128xf32> -> vector<8x128xf32>
    %c0_15 = arith.constant 0 : index
    %c0_16 = arith.constant 0 : index
    %20 = vector.load %arg7[%c0_15, %c0_16] : memref<1x128xf32, #tpu.memory_space<vmem>>, vector<1x128xf32>
    %21 = vector.broadcast %20 : vector<1x128xf32> to vector<8x128xf32>
    %22 = arith.addf %19, %21 : vector<8x128xf32>
    %cst_17 = arith.constant 0.000000e+00 : f32
    %23 = vector.broadcast %cst_17 : f32 to vector<8x128xf32>
    %24 = arith.maximumf %22, %23 : vector<8x128xf32>
    %25 = arith.truncf %24 : vector<8x128xf32> to vector<8x128xbf16>
    %c0_18 = arith.constant 0 : index
    %c0_19 = arith.constant 0 : index
    %26 = vector.load %arg8[%c0_18, %c0_19] : memref<128x8xbf16, #tpu.memory_space<vmem>>, vector<128x8xbf16>
    %cst_20 = arith.constant dense<0.000000e+00> : vector<8x8xf32>
    %27 = tpu.matmul %25, %26, %cst_20 {dimension_numbers = #tpu.dot_dimension_numbers<[1], [0], [0], [1], [0, 0, 1, 1], [], []>} : vector<8x128xbf16>, vector<128x8xbf16>, vector<8x8xf32> -> vector<8x8xf32>
    %c0_21 = arith.constant 0 : index
    %c0_22 = arith.constant 0 : index
    %28 = vector.load %arg9[%c0_21, %c0_22] : memref<1x8xf32, #tpu.memory_space<vmem>>, vector<1x8xf32>
    %29 = vector.broadcast %28 : vector<1x8xf32> to vector<8x8xf32>
    %30 = arith.addf %27, %29 : vector<8x8xf32>
    %c0_23 = arith.constant 0 : index
    %c0_24 = arith.constant 0 : index
    %31 = vector.load %arg10[%c0_23, %c0_24] : memref<8x8xf32, #tpu.memory_space<vmem>>, vector<8x8xf32>
    tpu.vector_store %arg10[%c0_23, %c0_24], %30 {strides = array<i32>} : memref<8x8xf32, #tpu.memory_space<vmem>>, vector<8x8xf32>,
    return
  }
  func.func @transform_0(%arg0: i32) -> (i32, i32) {
    %c0_i32 = arith.constant 0 : i32
    %c0_i32_0 = arith.constant 0 : i32
    return %arg0, %c0_i32 : i32, i32
  }
  func.func @transform_1(%arg0: i32) -> (i32, i32) {
    %c0_i32 = arith.constant 0 : i32
    %c0_i32_0 = arith.constant 0 : i32
    %c0_i32_1 = arith.constant 0 : i32
    return %c0_i32, %c0_i32_0 : i32, i32
  }
  func.func @transform_2(%arg0: i32) -> (i32, i32) {
    %c0_i32 = arith.constant 0 : i32
    %c0_i32_0 = arith.constant 0 : i32
    %c0_i32_1 = arith.constant 0 : i32
    return %c0_i32, %c0_i32_0 : i32, i32
  }
  func.func @transform_3(%arg0: i32) -> (i32, i32) {
    %c0_i32 = arith.constant 0 : i32
    %c0_i32_0 = arith.constant 0 : i32
    %c0_i32_1 = arith.constant 0 : i32
    return %c0_i32, %c0_i32_0 : i32, i32
  }
  func.func @transform_4(%arg0: i32) -> (i32, i32) {
    %c0_i32 = arith.constant 0 : i32
    %c0_i32_0 = arith.constant 0 : i32
    %c0_i32_1 = arith.constant 0 : i32
    return %c0_i32, %c0_i32_0 : i32, i32
  }
  func.func @transform_5(%arg0: i32) -> (i32, i32) {
    %c0_i32 = arith.constant 0 : i32
    %c0_i32_0 = arith.constant 0 : i32
    %c0_i32_1 = arith.constant 0 : i32
    return %c0_i32, %c0_i32_0 : i32, i32
  }
  func.func @transform_6(%arg0: i32) -> (i32, i32) {
    %c0_i32 = arith.constant 0 : i32
    %c0_i32_0 = arith.constant 0 : i32
    %c0_i32_1 = arith.constant 0 : i32
    return %c0_i32, %c0_i32_0 : i32, i32
  }
  func.func @transform_7(%arg0: i32) -> (i32, i32) {
    %c0_i32 = arith.constant 0 : i32
    %c0_i32_0 = arith.constant 0 : i32
    %c0_i32_1 = arith.constant 0 : i32
    return %c0_i32, %c0_i32_0 : i32, i32
  }
  func.func @transform_8(%arg0: i32) -> (i32, i32) {
    %c0_i32 = arith.constant 0 : i32
    %c0_i32_0 = arith.constant 0 : i32
    %c0_i32_1 = arith.constant 0 : i32
    return %c0_i32, %c0_i32_0 : i32, i32
  }
  func.func @transform_9(%arg0: i32) -> (i32, i32) {
    %c0_i32 = arith.constant 0 : i32
    %c0_i32_0 = arith.constant 0 : i32
    return %arg0, %c0_i32 : i32, i32
  }
}

</mosaic_0001>

<llo_original>
// kernel: tpu_custom_call.1
$region0: #{tpu_custom_call.1}
  #allocation0 [shape = 'u32[]', space=smem, size = 0x4, offset = 0x4, fixed_abs, tag = 'smem constant byte address 0x4 - core index']
  #allocation1 [shape = 'u32[144,128]{1,0:T(1,128)}', space=vmem, size = 0x12000, scoped, tag = 'internal scratch']
  %s0 = inlined_call_operand.vmem [shape: f32[8,32], index: 0, kind: input, shape index: {}]
  %s1 = inlined_call_operand.vmem [shape: bf16[32,128], index: 1, kind: input, shape index: {}]
  %s2 = inlined_call_operand.vmem [shape: f32[1,128], index: 2, kind: input, shape index: {}]
  %s3 = inlined_call_operand.vmem [shape: bf16[128,64], index: 3, kind: input, shape index: {}]
  %s4 = inlined_call_operand.vmem [shape: f32[1,64], index: 4, kind: input, shape index: {}]
  %s5 = inlined_call_operand.vmem [shape: bf16[64,128], index: 5, kind: input, shape index: {}]
  %s6 = inlined_call_operand.vmem [shape: f32[1,128], index: 6, kind: input, shape index: {}]
  %s7 = inlined_call_operand.vmem [shape: bf16[128,8], index: 7, kind: input, shape index: {}]
  %s8 = inlined_call_operand.vmem [shape: f32[1,8], index: 8, kind: input, shape index: {}]
  %s9 = inlined_call_operand.hbm [shape: f32[8,8], index: 9, kind: output, shape index: {}]
  %s10 = sld [smem:[#allocation0]]
  $region46: #{tpu_custom_call.1} parent=0
    _
  %s12 = ssub.s32 1, %s10
  %s13 = scalar_select 0, %s12, %s10
  $region1: #{tpu_custom_call.1} parent=0
    #allocation2 [shape = 'u8[4096]{0}', space=vmem, size = 0x1000, scoped, tag = 'output window, operand 0, single buffered']
    #allocation3 [shape = 's32[1]{0}', space=sflag, size = 0x4, scoped, tag = 'scoped memory for tpu_custom_call.1']
    %14 = vsyncpa [#allocation3], 0
    // Predicated region
    $region2: #{tpu_custom_call.1} parent=1 // pred_check
      _
    $region3: #{tpu_custom_call.1} parent=1 // pred_check_branch
      %16 = sbr.rel (0) target = $region5
    $region4: #{tpu_custom_call.1} parent=1 // pred_region
      _
    $region5: #{tpu_custom_call.1} parent=1 // pred_fallthru
      _
    // Predicated region
    $region6: #{tpu_custom_call.1} parent=1 // pred_check
      _
    $region7: #{tpu_custom_call.1} parent=1 // pred_check_branch
      %18 = sbr.rel (0) target = $region9
    $region8: #{tpu_custom_call.1} parent=1 // pred_region
      _
    $region9: #{tpu_custom_call.1} parent=1 // pred_fallthru
      _
    // Predicated region
    $region10: #{tpu_custom_call.1} parent=1 // pred_check
      _
    $region11: #{tpu_custom_call.1} parent=1 // pred_check_branch
      %20 = sbr.rel (0) target = $region13
    $region12: #{tpu_custom_call.1} parent=1 // pred_region
      _
    $region13: #{tpu_custom_call.1} parent=1 // pred_fallthru
      _
    // Predicated region
    $region14: #{tpu_custom_call.1} parent=1 // pred_check
      _
    $region15: #{tpu_custom_call.1} parent=1 // pred_check_branch
      %22 = sbr.rel (0) target = $region17
    $region16: #{tpu_custom_call.1} parent=1 // pred_region
      _
    $region17: #{tpu_custom_call.1} parent=1 // pred_fallthru
      _
    // Predicated region
    $region18: #{tpu_custom_call.1} parent=1 // pred_check
      _
    $region19: #{tpu_custom_call.1} parent=1 // pred_check_branch
      %24 = sbr.rel (0) target = $region21
    $region20: #{tpu_custom_call.1} parent=1 // pred_region
      _
    $region21: #{tpu_custom_call.1} parent=1 // pred_fallthru
      _
    // Predicated region
    $region22: #{tpu_custom_call.1} parent=1 // pred_check
      _
    $region23: #{tpu_custom_call.1} parent=1 // pred_check_branch
      %26 = sbr.rel (0) target = $region25
    $region24: #{tpu_custom_call.1} parent=1 // pred_region
      _
    $region25: #{tpu_custom_call.1} parent=1 // pred_fallthru
      _
    // Predicated region
    $region26: #{tpu_custom_call.1} parent=1 // pred_check
      _
    $region27: #{tpu_custom_call.1} parent=1 // pred_check_branch
      %28 = sbr.rel (0) target = $region29
    $region28: #{tpu_custom_call.1} parent=1 // pred_region
      _
    $region29: #{tpu_custom_call.1} parent=1 // pred_fallthru
      _
    // Predicated region
    $region30: #{tpu_custom_call.1} parent=1 // pred_check
      _
    $region31: #{tpu_custom_call.1} parent=1 // pred_check_branch
      %30 = sbr.rel (0) target = $region33
    $region32: #{tpu_custom_call.1} parent=1 // pred_region
      _
    $region33: #{tpu_custom_call.1} parent=1 // pred_fallthru
      _
    // Predicated region
    $region34: #{tpu_custom_call.1} parent=1 // pred_check
      _
    $region35: #{tpu_custom_call.1} parent=1 // pred_check_branch
      %32 = sbr.rel (0) target = $region37
    $region36: #{tpu_custom_call.1} parent=1 // pred_region
      _
    $region37: #{tpu_custom_call.1} parent=1 // pred_fallthru
      _
    %v34 = vld [vmem:[%s0] sm:$0xff]
    %v35 = vpack.c.bf16 %v34, %v34
    %v36 = vld [vmem:[%s1] sm:$0xf]
    %v37 = vld [vmem:[%s1 + $0x4] sm:$0xf]
    %v38 = vld [vmem:[%s1 + $0x8] sm:$0xf]
    %v39 = vld [vmem:[%s1 + $0xc] sm:$0xf]
    %v40 = vld [vmem:[%s2] sm:$0x1]
    %v42 = vlaneseq
    %v43 = vshrl.u32 %v42, 7
    %v44 = vsub.s32 0, %v43
    %v45 = vrot.slane %v40, %v44
    %v51 = vunpack.c.l.b16 %v36
    %v52 = vunpack.c.l.b16 %v37
    %v53 = vunpack.c.l.b16 %v38
    %v54 = vunpack.c.l.b16 %v39
    %v55 = vpack.c.b16 %v52, %v51
    %v56 = vpack.c.b16 %v54, %v53
    %vm59 = vcmask 261120
    %v61 = vsel %vm59, %v35, 0
    %63 = vmatprep.subr.bf16.mxu0 0
    %64 = vmatpush1.bf16.msra.mxu0 0
    %65 = vmatprep.subr.bf16.mxu0 0
    %66 = vmatpush1.bf16.msra.mxu0 0
    %67 = vmatprep.subr.bf16.mxu0 0
    %68 = vmatpush1.bf16.msra.mxu0 0
    %69 = vmatprep.subr.bf16.mxu0 0
    %70 = vmatpush1.bf16.msra.mxu0 0
    %71 = vmatprep.subr.bf16.mxu0 0
    %72 = vmatpush1.bf16.msra.mxu0 0
    %73 = vmatprep.subr.bf16.mxu0 0
    %74 = vmatpush1.bf16.msra.mxu0 0
    %75 = vmatprep.subr.bf16.mxu0 0
    %76 = vmatpush1.bf16.msra.mxu0 %v56
    %77 = vmatprep.subr.bf16.mxu0 0
    %78 = vmatpush1.bf16.msra.mxu0 %v55
    %79 = vmatprep.subr.bf16.mxu0 0
    %80 = vmatpush2.bf16.msra.mxu0 0
    %81 = vmatprep.subr.bf16.mxu0 0
    %82 = vmatpush2.bf16.msra.mxu0 0
    %83 = vmatprep.subr.bf16.mxu0 0
    %84 = vmatpush2.bf16.msra.mxu0 0
    %85 = vmatprep.subr.bf16.mxu0 0
    %86 = vmatpush2.bf16.msra.mxu0 0
    %87 = vmatprep.subr.bf16.mxu0 0
    %88 = vmatpush2.bf16.msra.mxu0 0
    %89 = vmatprep.subr.bf16.mxu0 0
    %90 = vmatpush2.bf16.msra.mxu0 0
    %91 = vmatprep.subr.bf16.mxu0 0
    %92 = vmatpush2.bf16.msra.mxu0 0
    %93 = vmatprep.subr.bf16.mxu0 0
    %94 = vmatpush2.bf16.msra.mxu0 0
    %95 = vmatprep.mubr.bf16.mxu0 0
    %96 = vmatmul.mubr.bf16.gmra.mxu0 %v61
    %v97 = vpop.f32.mrf.mxu0
    %v98 = vadd.f32 %v45, %v97
    %v99 = vpop.f32.mrf.mxu0
    %v100 = vpop.f32.mrf.mxu0
    %v101 = vpop.f32.mrf.mxu0
    %102 = vdwg.mxu0
    %v103 = vmax.f32 %v98, 0.0
    %v104 = vpack.c.bf16 %v103, %v103
    %v105 = vld [vmem:[%s3] sm:$0xf]
    %v106 = vld [vmem:[%s3 + $0x4] sm:$0xf]
    %v107 = vld [vmem:[%s3 + $0x8] sm:$0xf]
    %v108 = vld [vmem:[%s3 + $0xc] sm:$0xf]
    %v109 = vld [vmem:[%s3 + $0x10] sm:$0xf]
    %v110 = vld [vmem:[%s3 + $0x14] sm:$0xf]
    %v111 = vld [vmem:[%s3 + $0x18] sm:$0xf]
    %v112 = vld [vmem:[%s3 + $0x1c] sm:$0xf]
    %v113 = vld [vmem:[%s3 + $0x20] sm:$0xf]
    %v114 = vld [vmem:[%s3 + $0x24] sm:$0xf]
    %v115 = vld [vmem:[%s3 + $0x28] sm:$0xf]
    %v116 = vld [vmem:[%s3 + $0x2c] sm:$0xf]
    %v117 = vld [vmem:[%s3 + $0x30] sm:$0xf]
    %v118 = vld [vmem:[%s3 + $0x34] sm:$0xf]
    %v119 = vld [vmem:[%s3 + $0x38] sm:$0xf]
    %v120 = vld [vmem:[%s3 + $0x3c] sm:$0xf]
    %v121 = vld [vmem:[%s4] sm:$0x1]
    %v123 = vlaneseq
    %v124 = vshrl.u32 %v123, 7
    %v125 = vsub.s32 0, %v124
    %v126 = vrot.slane %v121, %v125
    %v144 = vunpack.c.l.b16 %v105
    %v145 = vunpack.c.l.b16 %v106
    %v146 = vunpack.c.l.b16 %v107
    %v147 = vunpack.c.l.b16 %v108
    %v148 = vunpack.c.l.b16 %v109
    %v149 = vunpack.c.l.b16 %v110
    %v150 = vunpack.c.l.b16 %v111
    %v151 = vunpack.c.l.b16 %v112
    %v152 = vunpack.c.l.b16 %v113
    %v153 = vunpack.c.l.b16 %v114
    %v154 = vunpack.c.l.b16 %v115
    %v155 = vunpack.c.l.b16 %v116
    %v156 = vunpack.c.l.b16 %v117
    %v157 = vunpack.c.l.b16 %v118
    %v158 = vunpack.c.l.b16 %v119
    %v159 = vunpack.c.l.b16 %v120
    %v160 = vpack.c.b16 %v145, %v144
    %v161 = vpack.c.b16 %v147, %v146
    %v162 = vpack.c.b16 %v149, %v148
    %v163 = vpack.c.b16 %v151, %v150
    %v164 = vpack.c.b16 %v153, %v152
    %v165 = vpack.c.b16 %v155, %v154
    %v166 = vpack.c.b16 %v157, %v156
    %v167 = vpack.c.b16 %v159, %v158
    %176 = vmatprep.subr.bf16.mxu0 0
    %177 = vmatpush1.bf16.msra.mxu0 %v167
    %178 = vmatprep.subr.bf16.mxu0 0
    %179 = vmatpush1.bf16.msra.mxu0 %v166
    %180 = vmatprep.subr.bf16.mxu0 0
    %181 = vmatpush1.bf16.msra.mxu0 %v165
    %182 = vmatprep.subr.bf16.mxu0 0
    %183 = vmatpush1.bf16.msra.mxu0 %v164
    %184 = vmatprep.subr.bf16.mxu0 0
    %185 = vmatpush1.bf16.msra.mxu0 %v163
    %186 = vmatprep.subr.bf16.mxu0 0
    %187 = vmatpush1.bf16.msra.mxu0 %v162
    %188 = vmatprep.subr.bf16.mxu0 0
    %189 = vmatpush1.bf16.msra.mxu0 %v161
    %190 = vmatprep.subr.bf16.mxu0 0
    %191 = vmatpush1.bf16.msra.mxu0 %v160
    %192 = vmatprep.subr.bf16.mxu0 0
    %193 = vmatpush2.bf16.msra.mxu0 0
    %194 = vmatprep.subr.bf16.mxu0 0
    %195 = vmatpush2.bf16.msra.mxu0 0
    %196 = vmatprep.subr.bf16.mxu0 0
    %197 = vmatpush2.bf16.msra.mxu0 0
    %198 = vmatprep.subr.bf16.mxu0 0
    %199 = vmatpush2.bf16.msra.mxu0 0
    %200 = vmatprep.subr.bf16.mxu0 0
    %201 = vmatpush2.bf16.msra.mxu0 0
    %202 = vmatprep.subr.bf16.mxu0 0
    %203 = vmatpush2.bf16.msra.mxu0 0
    %204 = vmatprep.subr.bf16.mxu0 0
    %205 = vmatpush2.bf16.msra.mxu0 0
    %206 = vmatprep.subr.bf16.mxu0 0
    %207 = vmatpush2.bf16.msra.mxu0 0
    %208 = vmatprep.mubr.bf16.mxu0 0
    %209 = vmatmul.mubr.bf16.gmra.mxu0 %v104
    %v210 = vpop.f32.mrf.mxu0
    %v211 = vadd.f32 %v126, %v210
    %v212 = vpop.f32.mrf.mxu0
    %v213 = vpop.f32.mrf.mxu0
    %v214 = vpop.f32.mrf.mxu0
    %215 = vdwg.mxu0
    %v216 = vmax.f32 %v211, 0.0
    %v217 = vpack.c.bf16 %v216, %v216
    %v218 = vld [vmem:[%s5] sm:$0xf]
    %v219 = vld [vmem:[%s5 + $0x4] sm:$0xf]
    %v220 = vld [vmem:[%s5 + $0x8] sm:$0xf]
    %v221 = vld [vmem:[%s5 + $0xc] sm:$0xf]
    %v222 = vld [vmem:[%s5 + $0x10] sm:$0xf]
    %v223 = vld [vmem:[%s5 + $0x14] sm:$0xf]
    %v224 = vld [vmem:[%s5 + $0x18] sm:$0xf]
    %v225 = vld [vmem:[%s5 + $0x1c] sm:$0xf]
    %v226 = vld [vmem:[%s6] sm:$0x1]
    %v228 = vlaneseq
    %v229 = vshrl.u32 %v228, 7
    %v230 = vsub.s32 0, %v229
    %v231 = vrot.slane %v226, %v230
    %v241 = vunpack.c.l.b16 %v218
    %v242 = vunpack.c.l.b16 %v219
    %v243 = vunpack.c.l.b16 %v220
    %v244 = vunpack.c.l.b16 %v221
    %v245 = vunpack.c.l.b16 %v222
    %v246 = vunpack.c.l.b16 %v223
    %v247 = vunpack.c.l.b16 %v224
    %v248 = vunpack.c.l.b16 %v225
    %v249 = vpack.c.b16 %v242, %v241
    %v250 = vpack.c.b16 %v244, %v243
    %v251 = vpack.c.b16 %v246, %v245
    %v252 = vpack.c.b16 %v248, %v247
    %vm257 = vcmask 523264
    %v259 = vsel %vm257, %v217, 0
    %261 = vmatprep.subr.bf16.mxu0 0
    %262 = vmatpush1.bf16.msra.mxu0 0
    %263 = vmatprep.subr.bf16.mxu0 0
    %264 = vmatpush1.bf16.msra.mxu0 0
    %265 = vmatprep.subr.bf16.mxu0 0
    %266 = vmatpush1.bf16.msra.mxu0 0
    %267 = vmatprep.subr.bf16.mxu0 0
    %268 = vmatpush1.bf16.msra.mxu0 0
    %269 = vmatprep.subr.bf16.mxu0 0
    %270 = vmatpush1.bf16.msra.mxu0 %v252
    %271 = vmatprep.subr.bf16.mxu0 0
    %272 = vmatpush1.bf16.msra.mxu0 %v251
    %273 = vmatprep.subr.bf16.mxu0 0
    %274 = vmatpush1.bf16.msra.mxu0 %v250
    %275 = vmatprep.subr.bf16.mxu0 0
    %276 = vmatpush1.bf16.msra.mxu0 %v249
    %277 = vmatprep.subr.bf16.mxu0 0
    %278 = vmatpush2.bf16.msra.mxu0 0
    %279 = vmatprep.subr.bf16.mxu0 0
    %280 = vmatpush2.bf16.msra.mxu0 0
    %281 = vmatprep.subr.bf16.mxu0 0
    %282 = vmatpush2.bf16.msra.mxu0 0
    %283 = vmatprep.subr.bf16.mxu0 0
    %284 = vmatpush2.bf16.msra.mxu0 0
    %285 = vmatprep.subr.bf16.mxu0 0
    %286 = vmatpush2.bf16.msra.mxu0 0
    %287 = vmatprep.subr.bf16.mxu0 0
    %288 = vmatpush2.bf16.msra.mxu0 0
    %289 = vmatprep.subr.bf16.mxu0 0
    %290 = vmatpush2.bf16.msra.mxu0 0
    %291 = vmatprep.subr.bf16.mxu0 0
    %292 = vmatpush2.bf16.msra.mxu0 0
    %293 = vmatprep.mubr.bf16.mxu0 0
    %294 = vmatmul.mubr.bf16.gmra.mxu0 %v259
    %v295 = vpop.f32.mrf.mxu0
    %v296 = vadd.f32 %v231, %v295
    %v297 = vpop.f32.mrf.mxu0
    %v298 = vpop.f32.mrf.mxu0
    %v299 = vpop.f32.mrf.mxu0
    %300 = vdwg.mxu0
    %v301 = vmax.f32 %v296, 0.0
    %v302 = vpack.c.bf16 %v301, %v301
    %v303 = vld [vmem:[%s7] sm:$0xf]
    %v304 = vld [vmem:[%s7 + $0x4] sm:$0xf]
    %v305 = vld [vmem:[%s7 + $0x8] sm:$0xf]
    %v306 = vld [vmem:[%s7 + $0xc] sm:$0xf]
    %v307 = vld [vmem:[%s7 + $0x10] sm:$0xf]
    %v308 = vld [vmem:[%s7 + $0x14] sm:$0xf]
    %v309 = vld [vmem:[%s7 + $0x18] sm:$0xf]
    %v310 = vld [vmem:[%s7 + $0x1c] sm:$0xf]
    %v311 = vld [vmem:[%s7 + $0x20] sm:$0xf]
    %v312 = vld [vmem:[%s7 + $0x24] sm:$0xf]
    %v313 = vld [vmem:[%s7 + $0x28] sm:$0xf]
    %v314 = vld [vmem:[%s7 + $0x2c] sm:$0xf]
    %v315 = vld [vmem:[%s7 + $0x30] sm:$0xf]
    %v316 = vld [vmem:[%s7 + $0x34] sm:$0xf]
    %v317 = vld [vmem:[%s7 + $0x38] sm:$0xf]
    %v318 = vld [vmem:[%s7 + $0x3c] sm:$0xf]
    %v319 = vld [vmem:[%s8] sm:$0x1]
    %v321 = vlaneseq
    %v322 = vshrl.u32 %v321, 7
    %v323 = vsub.s32 0, %v322
    %v324 = vrot.slane %v319, %v323
    %v342 = vunpack.c.l.b16 %v303
    %v343 = vunpack.c.l.b16 %v304
    %v344 = vunpack.c.l.b16 %v305
    %v345 = vunpack.c.l.b16 %v306
    %v346 = vunpack.c.l.b16 %v307
    %v347 = vunpack.c.l.b16 %v308
    %v348 = vunpack.c.l.b16 %v309
    %v349 = vunpack.c.l.b16 %v310
    %v350 = vunpack.c.l.b16 %v311
    %v351 = vunpack.c.l.b16 %v312
    %v352 = vunpack.c.l.b16 %v313
    %v353 = vunpack.c.l.b16 %v314
    %v354 = vunpack.c.l.b16 %v315
    %v355 = vunpack.c.l.b16 %v316
    %v356 = vunpack.c.l.b16 %v317
    %v357 = vunpack.c.l.b16 %v318
    %v358 = vpack.c.b16 %v343, %v342
    %v359 = vpack.c.b16 %v345, %v344
    %v360 = vpack.c.b16 %v347, %v346
    %v361 = vpack.c.b16 %v349, %v348
    %v362 = vpack.c.b16 %v351, %v350
    %v363 = vpack.c.b16 %v353, %v352
    %v364 = vpack.c.b16 %v355, %v354
    %v365 = vpack.c.b16 %v357, %v356
    %374 = vmatprep.subr.bf16.mxu0 0
    %375 = vmatpush1.bf16.msra.mxu0 %v365
    %376 = vmatprep.subr.bf16.mxu0 0
    %377 = vmatpush1.bf16.msra.mxu0 %v364
    %378 = vmatprep.subr.bf16.mxu0 0
    %379 = vmatpush1.bf16.msra.mxu0 %v363
    %380 = vmatprep.subr.bf16.mxu0 0
    %381 = vmatpush1.bf16.msra.mxu0 %v362
    %382 = vmatprep.subr.bf16.mxu0 0
    %383 = vmatpush1.bf16.msra.mxu0 %v361
    %384 = vmatprep.subr.bf16.mxu0 0
    %385 = vmatpush1.bf16.msra.mxu0 %v360
    %386 = vmatprep.subr.bf16.mxu0 0
    %387 = vmatpush1.bf16.msra.mxu0 %v359
    %388 = vmatprep.subr.bf16.mxu0 0
    %389 = vmatpush1.bf16.msra.mxu0 %v358
    %390 = vmatprep.subr.bf16.mxu0 0
    %391 = vmatpush2.bf16.msra.mxu0 0
    %392 = vmatprep.subr.bf16.mxu0 0
    %393 = vmatpush2.bf16.msra.mxu0 0
    %394 = vmatprep.subr.bf16.mxu0 0
    %395 = vmatpush2.bf16.msra.mxu0 0
    %396 = vmatprep.subr.bf16.mxu0 0
    %397 = vmatpush2.bf16.msra.mxu0 0
    %398 = vmatprep.subr.bf16.mxu0 0
    %399 = vmatpush2.bf16.msra.mxu0 0
    %400 = vmatprep.subr.bf16.mxu0 0
    %401 = vmatpush2.bf16.msra.mxu0 0
    %402 = vmatprep.subr.bf16.mxu0 0
    %403 = vmatpush2.bf16.msra.mxu0 0
    %404 = vmatprep.subr.bf16.mxu0 0
    %405 = vmatpush2.bf16.msra.mxu0 0
    %406 = vmatprep.mubr.bf16.mxu0 0
    %407 = vmatmul.mubr.bf16.gmra.mxu0 %v302
    %v408 = vpop.f32.mrf.mxu0
    %v409 = vadd.f32 %v324, %v408
    %v410 = vpop.f32.mrf.mxu0
    %v411 = vpop.f32.mrf.mxu0
    %v412 = vpop.f32.mrf.mxu0
    %413 = vdwg.mxu0
    %vm414 = vcmask 64512
    %415 = vst.msk [vmem:[#allocation2] sm:$0xff] %vm414, %v409
    // Predicated region
    $region38: #{tpu_custom_call.1} parent=1 // pred_check
      _
    $region39: #{tpu_custom_call.1} parent=1 // pred_check_branch
      %417 = sbr.rel (0) target = $region41
    $region40: #{tpu_custom_call.1} parent=1 // pred_region
      %s419 = ssub.s32 128, 128
      %420 = vsyncadd [#allocation3], %s419
      %s422 = sshll.u32 [#allocation2], 4
      %s423 = int_to_ptr.vmem [resolvable:$true] %s422
      %425 = dma.vmem_to_hbm [thread:$0]  %s423, 128, %s9, [#allocation3]
    $region41: #{tpu_custom_call.1} parent=1 // pred_fallthru
      _
    // Predicated region
    $region42: #{tpu_custom_call.1} parent=1 // pred_check
      _
    $region43: #{tpu_custom_call.1} parent=1 // pred_check_branch
      %427 = sbr.rel (0) target = $region45
    $region44: #{tpu_custom_call.1} parent=1 // pred_region
      %428 = dma.done [#allocation3], 128
    $region45: #{tpu_custom_call.1} parent=1 // pred_fallthru
      _
    %429 = vsyncpa [#allocation3], 1

</llo_original>
